<compile_context>
chip_gen: v6e
topology: v6e:2x2x1
jax: 0.10.0
libtpu: 0.0.40
codegen_flags: <defaults>
</compile_context>

<pallas_src>
import math
import jax
import jax.numpy as jnp
from jax import lax
from jax.experimental import pallas as pl
from jax.experimental.pallas import tpu as pltpu

NEG_SLOPE = 0.01  # PyTorch nn.LeakyReLU default


def _round_up(x, m):
    return (x + m - 1) // m * m


def dqn_kernel(x_ref, w01_ref, wh_ref, b_ref, w6_ref, b6_ref, o_ref):
    # x_ref: (tb, in) in its native layout.  The folded first layer contracts both last dims
    # (trans_b), so h comes out as (H, tb): features on sublanes, batch on the lane axis.
    x = x_ref[...].astype(w01_ref.dtype)                       # (tb, in), bf16/f32 operand
    h = lax.dot_general(w01_ref[...], x,
                        dimension_numbers=(((1,), (1,)), ((), ())),
                        preferred_element_type=jnp.float32) + b_ref[0]
    h = jnp.maximum(h, NEG_SLOPE * h)                          # LeakyReLU (f32, 2 VPU ops)
    # Remaining 4 hidden Linear+LeakyReLU layers (weights packed, sliced statically).
    for l in range(4):
        h = jnp.dot(wh_ref[l], h.astype(wh_ref.dtype),
                    preferred_element_type=jnp.float32) + b_ref[l + 1]
        h = jnp.maximum(h, NEG_SLOPE * h)
    # Final Linear H -> 1: lane-dense (1, tb) row, single unmasked store.
    o_ref[...] = jnp.dot(w6_ref[...], h.astype(w6_ref.dtype),
                         preferred_element_type=jnp.float32) + b6_ref[...]


def _prep_params(params, param_dtype):
    """Fold layer0 into layer1 (exact: no nonlinearity between them) and pack the rest."""
    (w0, b0), (w1, b1) = params[0], params[1]
    w01 = w1 @ w0                                   # (H, in), f32 fold
    b01 = w1 @ b0 + b1                              # (H, 1)
    wh = jnp.stack([params[i][0] for i in range(2, 6)])          # (4, H, H)
    b_all = jnp.stack([b01] + [params[i][1] for i in range(2, 6)])  # (5, H, 1)
    w6, b6 = params[6]
    return (w01.astype(param_dtype), wh.astype(param_dtype),
            b_all.astype(jnp.float32), w6.astype(param_dtype), b6.astype(jnp.float32))


def dqn_forward(x, params, *, tb=1024, param_dtype=jnp.bfloat16):
    """x: (B, in_size) f32.  params: 7 tuples (w (out,in), b (out,1)) in PyTorch layout.
    Returns (B, 1) f32, matching nn.Sequential(Linear, 5x[Linear, LeakyReLU], Linear)."""
    B, in_size = x.shape
    hidden = params[0][0].shape[0]

    # Batch tile: multiple of 128 (dense lane axis).  For B >= 256, cap so the grid has
    # at least 2 steps -> the "parallel" axis shards across both v7x TensorCores.
    tb = max(128, min(tb, _round_up(B, 128)))
    if B >= 256:
        tb = min(tb, _round_up((B + 1) // 2, 128))
    num_tiles = pl.cdiv(B, tb)
    b_pad = num_tiles * tb

    w01, wh, b_all, w6, b6 = _prep_params(params, param_dtype)

    # Only batch-row padding (no transpose pass over x); padded rows produce garbage columns
    # that are sliced away below and never contaminate valid columns.
    x_pad = x if b_pad == B else jnp.pad(x, ((0, b_pad - B), (0, 0)))

    in_specs = [
        pl.BlockSpec((tb, in_size), lambda i: (i, 0)),          # streaming input
        pl.BlockSpec(w01.shape, lambda i: (0, 0)),              # resident params below
        pl.BlockSpec(wh.shape, lambda i: (0, 0, 0)),
        pl.BlockSpec(b_all.shape, lambda i: (0, 0, 0)),
        pl.BlockSpec(w6.shape, lambda i: (0, 0)),
        pl.BlockSpec(b6.shape, lambda i: (0, 0)),
    ]

    w_itemsize = jnp.dtype(param_dtype).itemsize
    param_bytes = (w01.size + wh.size + w6.size) * w_itemsize + (b_all.size + b6.size) * 4
    cost = pl.CostEstimate(
        flops=2 * b_pad * (in_size * hidden + 4 * hidden * hidden + hidden),
        transcendentals=0,
        bytes_accessed=4 * (in_size * b_pad + b_pad) + param_bytes,
    )

    out = pl.pallas_call(
        dqn_kernel,
        out_shape=jax.ShapeDtypeStruct((1, b_pad), jnp.float32),
        grid=(num_tiles,),
        in_specs=in_specs,
        out_specs=pl.BlockSpec((1, tb), lambda i: (0, i)),
        compiler_params=pltpu.CompilerParams(dimension_semantics=("parallel",)),
        cost_estimate=cost,
    )(x_pad, w01, wh, b_all, w6, b6)
    return out[0, :B].reshape(B, 1)


def init_params(key, in_size, hidden):
    """Deterministic init mimicking PyTorch Linear: U(-1/sqrt(fan_in), 1/sqrt(fan_in)).
    Weights in PyTorch layout (out_features, in_features); biases as (out_features, 1)."""
    dims = [(hidden, in_size)] + [(hidden, hidden)] * 5 + [(1, hidden)]
    params = []
    for (fout, fin) in dims:
        key, kw, kb = jax.random.split(key, 3)
        bound = 1.0 / math.sqrt(fin)
        w = jax.random.uniform(kw, (fout, fin), jnp.float32, -bound, bound)
        b = jax.random.uniform(kb, (fout, 1), jnp.float32, -bound, bound)
        params.append((w, b))
    return params


def dqn_reference(x, params):
    """Pure-JAX reference identical to the PyTorch forward (x @ W.T + b)."""
    h = x @ params[0][0].T + params[0][1].T
    for w, b in params[1:6]:
        h = h @ w.T + b.T
        h = jnp.where(h > 0, h, NEG_SLOPE * h)
    w, b = params[6]
    return h @ w.T + b.T


if __name__ == "__main__":
    key = jax.random.PRNGKey(0)
    in_size, hidden = 8, 32
    kx, kx2, kp = jax.random.split(key, 3)
    params = init_params(kp, in_size, hidden)

    # Small batch (single grid step).  f32-weight path: tight check (also validates the fold).
    B = 8
    x = jax.random.normal(kx, (B, in_size), jnp.float32)
    ref = dqn_reference(x, params)
    out_f32 = jax.block_until_ready(dqn_forward(x, params, param_dtype=jnp.float32))
    assert out_f32.shape == (B, 1)
    assert jnp.allclose(out_f32, ref, atol=1e-4, rtol=1e-4), "f32 mismatch vs reference (B=8)"
    # Default bf16-operand path: looser tolerance vs the f32 reference.
    out_bf16 = jax.block_until_ready(dqn_forward(x, params))
    assert jnp.allclose(out_bf16, ref, atol=3e-2, rtol=3e-2), "bf16 mismatch vs reference (B=8)"

    # Larger, non-multiple-of-tile batch: multi-tile grid + ragged-batch padding/slicing.
    B2 = 1000
    x2 = jax.random.normal(kx2, (B2, in_size), jnp.float32)
    ref2 = dqn_reference(x2, params)
    out2_f32 = jax.block_until_ready(dqn_forward(x2, params, param_dtype=jnp.float32))
    assert out2_f32.shape == (B2, 1)
    assert jnp.allclose(out2_f32, ref2, atol=1e-4, rtol=1e-4), "f32 mismatch vs reference (B=1000)"
    out2 = jax.block_until_ready(dqn_forward(x2, params))
    assert jnp.allclose(out2, ref2, atol=3e-2, rtol=3e-2), "bf16 mismatch vs reference (B=1000)"

    print("KERNEL_OK")
</pallas_src>

<mosaic_0001>
module attributes {stable_mosaic.version = 11 : i64} {
  func.func @dqn_kernel(%arg0: i32, %arg1: memref<128x8xf32, #tpu.memory_space<vmem>>, %arg2: memref<32x8xf32, #tpu.memory_space<vmem>>, %arg3: memref<4x32x32xf32, #tpu.memory_space<vmem>>, %arg4: memref<5x32x1xf32, #tpu.memory_space<vmem>>, %arg5: memref<1x32xf32, #tpu.memory_space<vmem>>, %arg6: memref<1x1xf32, #tpu.memory_space<vmem>>, %arg7: memref<1x128xf32, #tpu.memory_space<vmem>>) attributes {dimension_semantics = [#tpu.dimension_semantics<parallel>], iteration_bounds = array<i64: 1>, scalar_prefetch = 0 : i64, scratch_operands = 0 : i64, tpu.core_type = #tpu.core_type<tc>, window_params = [{transform_indices = @transform_0, window_bounds = array<i64: 128, 8>}, {pipeline_mode = #tpu.pipeline_mode<synchronous>, transform_indices = @transform_1, window_bounds = array<i64: 32, 8>}, {pipeline_mode = #tpu.pipeline_mode<synchronous>, transform_indices = @transform_2, window_bounds = array<i64: 4, 32, 32>}, {pipeline_mode = #tpu.pipeline_mode<synchronous>, transform_indices = @transform_3, window_bounds = array<i64: 5, 32, 1>}, {pipeline_mode = #tpu.pipeline_mode<synchronous>, transform_indices = @transform_4, window_bounds = array<i64: 1, 32>}, {pipeline_mode = #tpu.pipeline_mode<synchronous>, transform_indices = @transform_5, window_bounds = array<i64: 1, 1>}, {transform_indices = @transform_6, window_bounds = array<i64: 1, 128>}]} {
    %c0 = arith.constant 0 : index
    %c0_0 = arith.constant 0 : index
    %0 = vector.load %arg1[%c0, %c0_0] : memref<128x8xf32, #tpu.memory_space<vmem>>, vector<128x8xf32>
    %c0_1 = arith.constant 0 : index
    %c0_2 = arith.constant 0 : index
    %1 = vector.load %arg2[%c0_1, %c0_2] : memref<32x8xf32, #tpu.memory_space<vmem>>, vector<32x8xf32>
    %cst = arith.constant dense<0.000000e+00> : vector<32x128xf32>
    %2 = tpu.matmul %1, %0, %cst {dimension_numbers = #tpu.dot_dimension_numbers<[1], [1], [0], [0], [0, 0, 1, 0], [], []>} : vector<32x8xf32>, vector<128x8xf32>, vector<32x128xf32> -> vector<32x128xf32>
    %c0_3 = arith.constant 0 : index
    %c0_4 = arith.constant 0 : index
    %c0_5 = arith.constant 0 : index
    %3 = vector.load %arg4[%c0_3, %c0_4, %c0_5] : memref<5x32x1xf32, #tpu.memory_space<vmem>>, vector<1x32x1xf32>
    %4 = vector.shape_cast %3 : vector<1x32x1xf32> to vector<32x1xf32>
    %5 = vector.broadcast %4 : vector<32x1xf32> to vector<32x128xf32>
    %6 = arith.addf %2, %5 : vector<32x128xf32>
    %cst_6 = arith.constant 0.00999999977 : f32
    %7 = vector.broadcast %cst_6 : f32 to vector<32x128xf32>
    %8 = arith.mulf %7, %6 : vector<32x128xf32>
    %9 = arith.maximumf %6, %8 : vector<32x128xf32>
    %c0_7 = arith.constant 0 : index
    %c0_8 = arith.constant 0 : index
    %c0_9 = arith.constant 0 : index
    %10 = vector.load %arg3[%c0_7, %c0_8, %c0_9] : memref<4x32x32xf32, #tpu.memory_space<vmem>>, vector<1x32x32xf32>
    %11 = vector.shape_cast %10 : vector<1x32x32xf32> to vector<32x32xf32>
    %cst_10 = arith.constant dense<0.000000e+00> : vector<32x128xf32>
    %12 = tpu.matmul %11, %9, %cst_10 {dimension_numbers = #tpu.dot_dimension_numbers<[1], [0], [0], [1], [0, 0, 1, 1], [], []>} : vector<32x32xf32>, vector<32x128xf32>, vector<32x128xf32> -> vector<32x128xf32>
    %c1 = arith.constant 1 : index
    %c0_11 = arith.constant 0 : index
    %c0_12 = arith.constant 0 : index
    %13 = vector.load %arg4[%c1, %c0_11, %c0_12] : memref<5x32x1xf32, #tpu.memory_space<vmem>>, vector<1x32x1xf32>
    %14 = vector.shape_cast %13 : vector<1x32x1xf32> to vector<32x1xf32>
    %15 = vector.broadcast %14 : vector<32x1xf32> to vector<32x128xf32>
    %16 = arith.addf %12, %15 : vector<32x128xf32>
    %cst_13 = arith.constant 0.00999999977 : f32
    %17 = vector.broadcast %cst_13 : f32 to vector<32x128xf32>
    %18 = arith.mulf %17, %16 : vector<32x128xf32>
    %19 = arith.maximumf %16, %18 : vector<32x128xf32>
    %c1_14 = arith.constant 1 : index
    %c0_15 = arith.constant 0 : index
    %c0_16 = arith.constant 0 : index
    %20 = vector.load %arg3[%c1_14, %c0_15, %c0_16] : memref<4x32x32xf32, #tpu.memory_space<vmem>>, vector<1x32x32xf32>
    %21 = vector.shape_cast %20 : vector<1x32x32xf32> to vector<32x32xf32>
    %cst_17 = arith.constant dense<0.000000e+00> : vector<32x128xf32>
    %22 = tpu.matmul %21, %19, %cst_17 {dimension_numbers = #tpu.dot_dimension_numbers<[1], [0], [0], [1], [0, 0, 1, 1], [], []>} : vector<32x32xf32>, vector<32x128xf32>, vector<32x128xf32> -> vector<32x128xf32>
    %c2 = arith.constant 2 : index
    %c0_18 = arith.constant 0 : index
    %c0_19 = arith.constant 0 : index
    %23 = vector.load %arg4[%c2, %c0_18, %c0_19] : memref<5x32x1xf32, #tpu.memory_space<vmem>>, vector<1x32x1xf32>
    %24 = vector.shape_cast %23 : vector<1x32x1xf32> to vector<32x1xf32>
    %25 = vector.broadcast %24 : vector<32x1xf32> to vector<32x128xf32>
    %26 = arith.addf %22, %25 : vector<32x128xf32>
    %cst_20 = arith.constant 0.00999999977 : f32
    %27 = vector.broadcast %cst_20 : f32 to vector<32x128xf32>
    %28 = arith.mulf %27, %26 : vector<32x128xf32>
    %29 = arith.maximumf %26, %28 : vector<32x128xf32>
    %c2_21 = arith.constant 2 : index
    %c0_22 = arith.constant 0 : index
    %c0_23 = arith.constant 0 : index
    %30 = vector.load %arg3[%c2_21, %c0_22, %c0_23] : memref<4x32x32xf32, #tpu.memory_space<vmem>>, vector<1x32x32xf32>
    %31 = vector.shape_cast %30 : vector<1x32x32xf32> to vector<32x32xf32>
    %cst_24 = arith.constant dense<0.000000e+00> : vector<32x128xf32>
    %32 = tpu.matmul %31, %29, %cst_24 {dimension_numbers = #tpu.dot_dimension_numbers<[1], [0], [0], [1], [0, 0, 1, 1], [], []>} : vector<32x32xf32>, vector<32x128xf32>, vector<32x128xf32> -> vector<32x128xf32>
    %c3 = arith.constant 3 : index
    %c0_25 = arith.constant 0 : index
    %c0_26 = arith.constant 0 : index
    %33 = vector.load %arg4[%c3, %c0_25, %c0_26] : memref<5x32x1xf32, #tpu.memory_space<vmem>>, vector<1x32x1xf32>
    %34 = vector.shape_cast %33 : vector<1x32x1xf32> to vector<32x1xf32>
    %35 = vector.broadcast %34 : vector<32x1xf32> to vector<32x128xf32>
    %36 = arith.addf %32, %35 : vector<32x128xf32>
    %cst_27 = arith.constant 0.00999999977 : f32
    %37 = vector.broadcast %cst_27 : f32 to vector<32x128xf32>
    %38 = arith.mulf %37, %36 : vector<32x128xf32>
    %39 = arith.maximumf %36, %38 : vector<32x128xf32>
    %c3_28 = arith.constant 3 : index
    %c0_29 = arith.constant 0 : index
    %c0_30 = arith.constant 0 : index
    %40 = vector.load %arg3[%c3_28, %c0_29, %c0_30] : memref<4x32x32xf32, #tpu.memory_space<vmem>>, vector<1x32x32xf32>
    %41 = vector.shape_cast %40 : vector<1x32x32xf32> to vector<32x32xf32>
    %cst_31 = arith.constant dense<0.000000e+00> : vector<32x128xf32>
    %42 = tpu.matmul %41, %39, %cst_31 {dimension_numbers = #tpu.dot_dimension_numbers<[1], [0], [0], [1], [0, 0, 1, 1], [], []>} : vector<32x32xf32>, vector<32x128xf32>, vector<32x128xf32> -> vector<32x128xf32>
    %c4 = arith.constant 4 : index
    %c0_32 = arith.constant 0 : index
    %c0_33 = arith.constant 0 : index
    %43 = vector.load %arg4[%c4, %c0_32, %c0_33] : memref<5x32x1xf32, #tpu.memory_space<vmem>>, vector<1x32x1xf32>
    %44 = vector.shape_cast %43 : vector<1x32x1xf32> to vector<32x1xf32>
    %45 = vector.broadcast %44 : vector<32x1xf32> to vector<32x128xf32>
    %46 = arith.addf %42, %45 : vector<32x128xf32>
    %cst_34 = arith.constant 0.00999999977 : f32
    %47 = vector.broadcast %cst_34 : f32 to vector<32x128xf32>
    %48 = arith.mulf %47, %46 : vector<32x128xf32>
    %49 = arith.maximumf %46, %48 : vector<32x128xf32>
    %c0_35 = arith.constant 0 : index
    %c0_36 = arith.constant 0 : index
    %50 = vector.load %arg5[%c0_35, %c0_36] : memref<1x32xf32, #tpu.memory_space<vmem>>, vector<1x32xf32>
    %cst_37 = arith.constant dense<0.000000e+00> : vector<1x128xf32>
    %51 = tpu.matmul %50, %49, %cst_37 {dimension_numbers = #tpu.dot_dimension_numbers<[1], [0], [0], [1], [0, 0, 1, 1], [], []>} : vector<1x32xf32>, vector<32x128xf32>, vector<1x128xf32> -> vector<1x128xf32>
    %c0_38 = arith.constant 0 : index
    %c0_39 = arith.constant 0 : index
    %52 = vector.load %arg6[%c0_38, %c0_39] : memref<1x1xf32, #tpu.memory_space<vmem>>, vector<1x1xf32>
    %53 = vector.broadcast %52 : vector<1x1xf32> to vector<1x128xf32>
    %54 = arith.addf %51, %53 : vector<1x128xf32>
    %c0_40 = arith.constant 0 : index
    %c0_41 = arith.constant 0 : index
    %55 = vector.load %arg7[%c0_40, %c0_41] : memref<1x128xf32, #tpu.memory_space<vmem>>, vector<1x128xf32>
    tpu.vector_store %arg7[%c0_40, %c0_41], %54 {strides = array<i32>} : memref<1x128xf32, #tpu.memory_space<vmem>>, vector<1x128xf32>,
    return
  }
  func.func @transform_0(%arg0: i32) -> (i32, i32) {
    %c0_i32 = arith.constant 0 : i32
    %c0_i32_0 = arith.constant 0 : i32
    return %arg0, %c0_i32 : i32, i32
  }
  func.func @transform_1(%arg0: i32) -> (i32, i32) {
    %c0_i32 = arith.constant 0 : i32
    %c0_i32_0 = arith.constant 0 : i32
    %c0_i32_1 = arith.constant 0 : i32
    return %c0_i32, %c0_i32_0 : i32, i32
  }
  func.func @transform_2(%arg0: i32) -> (i32, i32, i32) {
    %c0_i32 = arith.constant 0 : i32
    %c0_i32_0 = arith.constant 0 : i32
    %c0_i32_1 = arith.constant 0 : i32
    %c0_i32_2 = arith.constant 0 : i32
    return %c0_i32, %c0_i32_0, %c0_i32_1 : i32, i32, i32
  }
  func.func @transform_3(%arg0: i32) -> (i32, i32, i32) {
    %c0_i32 = arith.constant 0 : i32
    %c0_i32_0 = arith.constant 0 : i32
    %c0_i32_1 = arith.constant 0 : i32
    %c0_i32_2 = arith.constant 0 : i32
    return %c0_i32, %c0_i32_0, %c0_i32_1 : i32, i32, i32
  }
  func.func @transform_4(%arg0: i32) -> (i32, i32) {
    %c0_i32 = arith.constant 0 : i32
    %c0_i32_0 = arith.constant 0 : i32
    %c0_i32_1 = arith.constant 0 : i32
    return %c0_i32, %c0_i32_0 : i32, i32
  }
  func.func @transform_5(%arg0: i32) -> (i32, i32) {
    %c0_i32 = arith.constant 0 : i32
    %c0_i32_0 = arith.constant 0 : i32
    %c0_i32_1 = arith.constant 0 : i32
    return %c0_i32, %c0_i32_0 : i32, i32
  }
  func.func @transform_6(%arg0: i32) -> (i32, i32) {
    %c0_i32 = arith.constant 0 : i32
    %c0_i32_0 = arith.constant 0 : i32
    return %c0_i32, %arg0 : i32, i32
  }
}

</mosaic_0001>

<llo_original>
// kernel: tpu_custom_call.1
$region0: #{tpu_custom_call.1}
  #allocation0 [shape = 'u32[]', space=smem, size = 0x4, offset = 0x4, fixed_abs, tag = 'smem constant byte address 0x4 - core index']
  #allocation1 [shape = 'u32[144,128]{1,0:T(1,128)}', space=vmem, size = 0x12000, scoped, tag = 'internal scratch']
  #allocation2 [shape = 'f32[1,1]{1,0:T(1,128)S(1)}', space=vmem, size = 0x200, scoped, tag = 'scoped memory for tpu_custom_call.1']
  %s0 = inlined_call_operand.vmem [shape: f32[128,8], index: 0, kind: input, shape index: {}]
  %s1 = inlined_call_operand.vmem [shape: f32[32,8], index: 1, kind: input, shape index: {}]
  %s2 = inlined_call_operand.vmem [shape: f32[4,32,32], index: 2, kind: input, shape index: {}]
  %s3 = inlined_call_operand.vmem [shape: f32[5,32,1], index: 3, kind: input, shape index: {}]
  %s4 = inlined_call_operand.vmem [shape: f32[1,32], index: 4, kind: input, shape index: {}]
  %s5 = inlined_call_operand.<no memory space> [shape: f32[1,1], index: 5, kind: input, shape index: {}]
  %s6 = inlined_call_operand.hbm [shape: f32[1,128], index: 6, kind: output, shape index: {}]
  %s7 = sld [smem:[#allocation0]]
  $region34: #{tpu_custom_call.1} parent=0
    _
  %s9 = ssub.s32 1, %s7
  %s10 = scalar_select 0, %s9, %s7
  %v11 = vstv %s5
  %12 = vst [vmem:[#allocation2] sm:$0x1] %v11
  $region1: #{tpu_custom_call.1} parent=0
    #allocation3 [shape = 'u8[512]{0}', space=vmem, size = 0x400, scoped, tag = 'output window, operand 0, single buffered']
    #allocation4 [shape = 's32[1]{0}', space=sflag, size = 0x4, scoped, tag = 'scoped memory for tpu_custom_call.1']
    %13 = vsyncpa [#allocation4], 0
    // Predicated region
    $region2: #{tpu_custom_call.1} parent=1 // pred_check
      _
    $region3: #{tpu_custom_call.1} parent=1 // pred_check_branch
      %15 = sbr.rel (0) target = $region5
    $region4: #{tpu_custom_call.1} parent=1 // pred_region
      _
    $region5: #{tpu_custom_call.1} parent=1 // pred_fallthru
      _
    // Predicated region
    $region6: #{tpu_custom_call.1} parent=1 // pred_check
      _
    $region7: #{tpu_custom_call.1} parent=1 // pred_check_branch
      %17 = sbr.rel (0) target = $region9
    $region8: #{tpu_custom_call.1} parent=1 // pred_region
      _
    $region9: #{tpu_custom_call.1} parent=1 // pred_fallthru
      _
    // Predicated region
    $region10: #{tpu_custom_call.1} parent=1 // pred_check
      _
    $region11: #{tpu_custom_call.1} parent=1 // pred_check_branch
      %19 = sbr.rel (0) target = $region13
    $region12: #{tpu_custom_call.1} parent=1 // pred_region
      _
    $region13: #{tpu_custom_call.1} parent=1 // pred_fallthru
      _
    // Predicated region
    $region14: #{tpu_custom_call.1} parent=1 // pred_check
      _
    $region15: #{tpu_custom_call.1} parent=1 // pred_check_branch
      %21 = sbr.rel (0) target = $region17
    $region16: #{tpu_custom_call.1} parent=1 // pred_region
      _
    $region17: #{tpu_custom_call.1} parent=1 // pred_fallthru
      _
    // Predicated region
    $region18: #{tpu_custom_call.1} parent=1 // pred_check
      _
    $region19: #{tpu_custom_call.1} parent=1 // pred_check_branch
      %23 = sbr.rel (0) target = $region21
    $region20: #{tpu_custom_call.1} parent=1 // pred_region
      _
    $region21: #{tpu_custom_call.1} parent=1 // pred_fallthru
      _
    // Predicated region
    $region22: #{tpu_custom_call.1} parent=1 // pred_check
      _
    $region23: #{tpu_custom_call.1} parent=1 // pred_check_branch
      %25 = sbr.rel (0) target = $region25
    $region24: #{tpu_custom_call.1} parent=1 // pred_region
      _
    $region25: #{tpu_custom_call.1} parent=1 // pred_fallthru
      _
    %v26 = vld [vmem:[%s0] sm:$0xff]
    %v27 = vld [vmem:[%s0 + $0x8] sm:$0xff]
    %v28 = vld [vmem:[%s0 + $0x10] sm:$0xff]
    %v29 = vld [vmem:[%s0 + $0x18] sm:$0xff]
    %v30 = vld [vmem:[%s0 + $0x20] sm:$0xff]
    %v31 = vld [vmem:[%s0 + $0x28] sm:$0xff]
    %v32 = vld [vmem:[%s0 + $0x30] sm:$0xff]
    %v33 = vld [vmem:[%s0 + $0x38] sm:$0xff]
    %v34 = vld [vmem:[%s0 + $0x40] sm:$0xff]
    %v35 = vld [vmem:[%s0 + $0x48] sm:$0xff]
    %v36 = vld [vmem:[%s0 + $0x50] sm:$0xff]
    %v37 = vld [vmem:[%s0 + $0x58] sm:$0xff]
    %v38 = vld [vmem:[%s0 + $0x60] sm:$0xff]
    %v39 = vld [vmem:[%s0 + $0x68] sm:$0xff]
    %v40 = vld [vmem:[%s0 + $0x70] sm:$0xff]
    %v41 = vld [vmem:[%s0 + $0x78] sm:$0xff]
    %v42 = vld [vmem:[%s1] sm:$0xff]
    %v43 = vld [vmem:[%s1 + $0x8] sm:$0xff]
    %v44 = vld [vmem:[%s1 + $0x10] sm:$0xff]
    %v45 = vld [vmem:[%s1 + $0x18] sm:$0xff]
    %v46 = vld [vmem:[%s3] sm:$0xff]
    %v47 = vld [vmem:[%s3 + $0x8] sm:$0xff]
    %v48 = vld [vmem:[%s3 + $0x10] sm:$0xff]
    %v49 = vld [vmem:[%s3 + $0x18] sm:$0xff]
    %51 = vset.pattern.permute.xlu0 0
    %52 = vperm.xlu0 %51, %v46
    %v53 = vpop.permute.xlu0 %52
    %56 = vset.pattern.permute.xlu0 0
    %57 = vperm.xlu0 %56, %v47
    %v58 = vpop.permute.xlu0 %57
    %61 = vset.pattern.permute.xlu0 0
    %62 = vperm.xlu0 %61, %v48
    %v63 = vpop.permute.xlu0 %62
    %66 = vset.pattern.permute.xlu0 0
    %67 = vperm.xlu0 %66, %v49
    %v68 = vpop.permute.xlu0 %67
    %vm70 = vcmask 64512
    %v72 = vsel %vm70, %v42, 0
    %v75 = vsel %vm70, %v43, 0
    %v78 = vsel %vm70, %v44, 0
    %v81 = vsel %vm70, %v45, 0
    %v84 = vsel %vm70, %v26, 0
    %v87 = vsel %vm70, %v27, 0
    %v90 = vsel %vm70, %v28, 0
    %v93 = vsel %vm70, %v29, 0
    %v96 = vsel %vm70, %v30, 0
    %v99 = vsel %vm70, %v31, 0
    %v102 = vsel %vm70, %v32, 0
    %v105 = vsel %vm70, %v33, 0
    %v108 = vsel %vm70, %v34, 0
    %v111 = vsel %vm70, %v35, 0
    %v114 = vsel %vm70, %v36, 0
    %v117 = vsel %vm70, %v37, 0
    %v120 = vsel %vm70, %v38, 0
    %v123 = vsel %vm70, %v39, 0
    %v126 = vsel %vm70, %v40, 0
    %v129 = vsel %vm70, %v41, 0
    %131 = vmatprep.subr.mxu0 0.0
    %132 = vmatpush1.xpose.msra.mxu0 %v129
    %133 = vmatprep.subr.mxu0 0.0
    %134 = vmatpush1.xpose.msra.mxu0 %v126
    %135 = vmatprep.subr.mxu0 0.0
    %136 = vmatpush1.xpose.msra.mxu0 %v123
    %137 = vmatprep.subr.mxu0 0.0
    %138 = vmatpush1.xpose.msra.mxu0 %v120
    %139 = vmatprep.subr.mxu0 0.0
    %140 = vmatpush1.xpose.msra.mxu0 %v117
    %141 = vmatprep.subr.mxu0 0.0
    %142 = vmatpush1.xpose.msra.mxu0 %v114
    %143 = vmatprep.subr.mxu0 0.0
    %144 = vmatpush1.xpose.msra.mxu0 %v111
    %145 = vmatprep.subr.mxu0 0.0
    %146 = vmatpush1.xpose.msra.mxu0 %v108
    %147 = vmatprep.subr.mxu0 0.0
    %148 = vmatpush1.xpose.msra.mxu0 %v105
    %149 = vmatprep.subr.mxu0 0.0
    %150 = vmatpush1.xpose.msra.mxu0 %v102
    %151 = vmatprep.subr.mxu0 0.0
    %152 = vmatpush1.xpose.msra.mxu0 %v99
    %153 = vmatprep.subr.mxu0 0.0
    %154 = vmatpush1.xpose.msra.mxu0 %v96
    %155 = vmatprep.subr.mxu0 0.0
    %156 = vmatpush1.xpose.msra.mxu0 %v93
    %157 = vmatprep.subr.mxu0 0.0
    %158 = vmatpush1.xpose.msra.mxu0 %v90
    %159 = vmatprep.subr.mxu0 0.0
    %160 = vmatpush1.xpose.msra.mxu0 %v87
    %161 = vmatprep.subr.mxu0 0.0
    %162 = vmatpush1.xpose.msra.mxu0 %v84
    %163 = vmatprep.subr.mxu0 0.0
    %164 = vmatpush2.xpose.msra.mxu0 0.0
    %165 = vmatprep.subr.mxu0 0.0
    %166 = vmatpush2.xpose.msra.mxu0 0.0
    %167 = vmatprep.subr.mxu0 0.0
    %168 = vmatpush2.xpose.msra.mxu0 0.0
    %169 = vmatprep.subr.mxu0 0.0
    %170 = vmatpush2.xpose.msra.mxu0 0.0
    %171 = vmatprep.subr.mxu0 0.0
    %172 = vmatpush2.xpose.msra.mxu0 0.0
    %173 = vmatprep.subr.mxu0 0.0
    %174 = vmatpush2.xpose.msra.mxu0 0.0
    %175 = vmatprep.subr.mxu0 0.0
    %176 = vmatpush2.xpose.msra.mxu0 0.0
    %177 = vmatprep.subr.mxu0 0.0
    %178 = vmatpush2.xpose.msra.mxu0 0.0
    %179 = vmatprep.subr.mxu0 0.0
    %180 = vmatpush2.xpose.msra.mxu0 0.0
    %181 = vmatprep.subr.mxu0 0.0
    %182 = vmatpush2.xpose.msra.mxu0 0.0
    %183 = vmatprep.subr.mxu0 0.0
    %184 = vmatpush2.xpose.msra.mxu0 0.0
    %185 = vmatprep.subr.mxu0 0.0
    %186 = vmatpush2.xpose.msra.mxu0 0.0
    %187 = vmatprep.subr.mxu0 0.0
    %188 = vmatpush2.xpose.msra.mxu0 0.0
    %189 = vmatprep.subr.mxu0 0.0
    %190 = vmatpush2.xpose.msra.mxu0 0.0
    %191 = vmatprep.subr.mxu0 0.0
    %192 = vmatpush2.xpose.msra.mxu0 0.0
    %193 = vmatprep.subr.mxu0 0.0
    %194 = vmatpush2.xpose.msra.mxu0 0.0
    %195 = vmatprep.mubr.f32.mxu0 0.0
    %196 = vmatmul.mubr.f32.gmra.mxu0 %v72
    %v197 = vpop.f32.mrf.mxu0
    %v198 = vadd.f32 %v53, %v197
    %v199 = vpop.f32.mrf.mxu0
    %200 = vmatprep.mubr.f32.mxu0 0.0
    %201 = vmatmul.mubr.f32.gmra.mxu0 %v75
    %v202 = vpop.f32.mrf.mxu0
    %v203 = vadd.f32 %v58, %v202
    %v204 = vpop.f32.mrf.mxu0
    %205 = vmatprep.mubr.f32.mxu0 0.0
    %206 = vmatmul.mubr.f32.gmra.mxu0 %v78
    %v207 = vpop.f32.mrf.mxu0
    %v208 = vadd.f32 %v63, %v207
    %v209 = vpop.f32.mrf.mxu0
    %210 = vmatprep.mubr.f32.mxu0 0.0
    %211 = vmatmul.mubr.f32.gmra.mxu0 %v81
    %v212 = vpop.f32.mrf.mxu0
    %v213 = vadd.f32 %v68, %v212
    %v214 = vpop.f32.mrf.mxu0
    %215 = vdwg.mxu0
    %v216 = vmul.f32 %v198, 0.01
    %v217 = vmul.f32 %v203, 0.01
    %v218 = vmul.f32 %v208, 0.01
    %v219 = vmul.f32 %v213, 0.01
    %v220 = vmax.f32 %v198, %v216
    %v221 = vmax.f32 %v203, %v217
    %v222 = vmax.f32 %v208, %v218
    %v223 = vmax.f32 %v213, %v219
    %v224 = vld [vmem:[%s2] sm:$0xff]
    %v225 = vld [vmem:[%s2 + $0x8] sm:$0xff]
    %v226 = vld [vmem:[%s2 + $0x10] sm:$0xff]
    %v227 = vld [vmem:[%s2 + $0x18] sm:$0xff]
    %s228 = scalar_lea.vmem %s3, 32
    %v229 = vld [vmem:[%s228] sm:$0xff]
    %v230 = vld [vmem:[%s228 + $0x8] sm:$0xff]
    %v231 = vld [vmem:[%s228 + $0x10] sm:$0xff]
    %v232 = vld [vmem:[%s228 + $0x18] sm:$0xff]
    %234 = vset.pattern.permute.xlu0 0
    %235 = vperm.xlu0 %234, %v229
    %v236 = vpop.permute.xlu0 %235
    %239 = vset.pattern.permute.xlu0 0
    %240 = vperm.xlu0 %239, %v230
    %v241 = vpop.permute.xlu0 %240
    %244 = vset.pattern.permute.xlu0 0
    %245 = vperm.xlu0 %244, %v231
    %v246 = vpop.permute.xlu0 %245
    %249 = vset.pattern.permute.xlu0 0
    %250 = vperm.xlu0 %249, %v232
    %v251 = vpop.permute.xlu0 %250
    %vm253 = vcmask 261120
    %v255 = vsel %vm253, %v224, 0
    %v258 = vsel %vm253, %v225, 0
    %v261 = vsel %vm253, %v226, 0
    %v264 = vsel %vm253, %v227, 0
    %266 = vmatprep.subr.mxu0 0.0
    %267 = vmatpush1.msra.mxu0 0.0
    %268 = vmatprep.subr.mxu0 0.0
    %269 = vmatpush1.msra.mxu0 0.0
    %270 = vmatprep.subr.mxu0 0.0
    %271 = vmatpush1.msra.mxu0 0.0
    %272 = vmatprep.subr.mxu0 0.0
    %273 = vmatpush1.msra.mxu0 0.0
    %274 = vmatprep.subr.mxu0 0.0
    %275 = vmatpush1.msra.mxu0 0.0
    %276 = vmatprep.subr.mxu0 0.0
    %277 = vmatpush1.msra.mxu0 0.0
    %278 = vmatprep.subr.mxu0 0.0
    %279 = vmatpush1.msra.mxu0 0.0
    %280 = vmatprep.subr.mxu0 0.0
    %281 = vmatpush1.msra.mxu0 0.0
    %282 = vmatprep.subr.mxu0 0.0
    %283 = vmatpush1.msra.mxu0 0.0
    %284 = vmatprep.subr.mxu0 0.0
    %285 = vmatpush1.msra.mxu0 0.0
    %286 = vmatprep.subr.mxu0 0.0
    %287 = vmatpush1.msra.mxu0 0.0
    %288 = vmatprep.subr.mxu0 0.0
    %289 = vmatpush1.msra.mxu0 0.0
    %290 = vmatprep.subr.mxu0 0.0
    %291 = vmatpush1.msra.mxu0 %v223
    %292 = vmatprep.subr.mxu0 0.0
    %293 = vmatpush1.msra.mxu0 %v222
    %294 = vmatprep.subr.mxu0 0.0
    %295 = vmatpush1.msra.mxu0 %v221
    %296 = vmatprep.subr.mxu0 0.0
    %297 = vmatpush1.msra.mxu0 %v220
    %298 = vmatprep.subr.mxu0 0.0
    %299 = vmatpush2.msra.mxu0 0.0
    %300 = vmatprep.subr.mxu0 0.0
    %301 = vmatpush2.msra.mxu0 0.0
    %302 = vmatprep.subr.mxu0 0.0
    %303 = vmatpush2.msra.mxu0 0.0
    %304 = vmatprep.subr.mxu0 0.0
    %305 = vmatpush2.msra.mxu0 0.0
    %306 = vmatprep.subr.mxu0 0.0
    %307 = vmatpush2.msra.mxu0 0.0
    %308 = vmatprep.subr.mxu0 0.0
    %309 = vmatpush2.msra.mxu0 0.0
    %310 = vmatprep.subr.mxu0 0.0
    %311 = vmatpush2.msra.mxu0 0.0
    %312 = vmatprep.subr.mxu0 0.0
    %313 = vmatpush2.msra.mxu0 0.0
    %314 = vmatprep.subr.mxu0 0.0
    %315 = vmatpush2.msra.mxu0 0.0
    %316 = vmatprep.subr.mxu0 0.0
    %317 = vmatpush2.msra.mxu0 0.0
    %318 = vmatprep.subr.mxu0 0.0
    %319 = vmatpush2.msra.mxu0 0.0
    %320 = vmatprep.subr.mxu0 0.0
    %321 = vmatpush2.msra.mxu0 0.0
    %322 = vmatprep.subr.mxu0 0.0
    %323 = vmatpush2.msra.mxu0 0.0
    %324 = vmatprep.subr.mxu0 0.0
    %325 = vmatpush2.msra.mxu0 0.0
    %326 = vmatprep.subr.mxu0 0.0
    %327 = vmatpush2.msra.mxu0 0.0
    %328 = vmatprep.subr.mxu0 0.0
    %329 = vmatpush2.msra.mxu0 0.0
    %330 = vmatprep.mubr.f32.mxu0 0.0
    %331 = vmatmul.mubr.f32.gmra.mxu0 %v255
    %v332 = vpop.f32.mrf.mxu0
    %v333 = vadd.f32 %v236, %v332
    %v334 = vpop.f32.mrf.mxu0
    %335 = vmatprep.mubr.f32.mxu0 0.0
    %336 = vmatmul.mubr.f32.gmra.mxu0 %v258
    %v337 = vpop.f32.mrf.mxu0
    %v338 = vadd.f32 %v241, %v337
    %v339 = vpop.f32.mrf.mxu0
    %340 = vmatprep.mubr.f32.mxu0 0.0
    %341 = vmatmul.mubr.f32.gmra.mxu0 %v261
    %v342 = vpop.f32.mrf.mxu0
    %v343 = vadd.f32 %v246, %v342
    %v344 = vpop.f32.mrf.mxu0
    %345 = vmatprep.mubr.f32.mxu0 0.0
    %346 = vmatmul.mubr.f32.gmra.mxu0 %v264
    %v347 = vpop.f32.mrf.mxu0
    %v348 = vadd.f32 %v251, %v347
    %v349 = vpop.f32.mrf.mxu0
    %350 = vdwg.mxu0
    %v351 = vmul.f32 %v333, 0.01
    %v352 = vmul.f32 %v338, 0.01
    %v353 = vmul.f32 %v343, 0.01
    %v354 = vmul.f32 %v348, 0.01
    %v355 = vmax.f32 %v333, %v351
    %v356 = vmax.f32 %v338, %v352
    %v357 = vmax.f32 %v343, %v353
    %v358 = vmax.f32 %v348, %v354
    %s359 = scalar_lea.vmem %s2, 32
    %v360 = vld [vmem:[%s359] sm:$0xff]
    %v361 = vld [vmem:[%s359 + $0x8] sm:$0xff]
    %v362 = vld [vmem:[%s359 + $0x10] sm:$0xff]
    %v363 = vld [vmem:[%s359 + $0x18] sm:$0xff]
    %s364 = scalar_lea.vmem %s3, 64
    %v365 = vld [vmem:[%s364] sm:$0xff]
    %v366 = vld [vmem:[%s364 + $0x8] sm:$0xff]
    %v367 = vld [vmem:[%s364 + $0x10] sm:$0xff]
    %v368 = vld [vmem:[%s364 + $0x18] sm:$0xff]
    %370 = vset.pattern.permute.xlu0 0
    %371 = vperm.xlu0 %370, %v365
    %v372 = vpop.permute.xlu0 %371
    %375 = vset.pattern.permute.xlu0 0
    %376 = vperm.xlu0 %375, %v366
    %v377 = vpop.permute.xlu0 %376
    %380 = vset.pattern.permute.xlu0 0
    %381 = vperm.xlu0 %380, %v367
    %v382 = vpop.permute.xlu0 %381
    %385 = vset.pattern.permute.xlu0 0
    %386 = vperm.xlu0 %385, %v368
    %v387 = vpop.permute.xlu0 %386
    %v390 = vsel %vm253, %v360, 0
    %v393 = vsel %vm253, %v361, 0
    %v396 = vsel %vm253, %v362, 0
    %v399 = vsel %vm253, %v363, 0
    %401 = vmatprep.subr.mxu0 0.0
    %402 = vmatpush1.msra.mxu0 0.0
    %403 = vmatprep.subr.mxu0 0.0
    %404 = vmatpush1.msra.mxu0 0.0
    %405 = vmatprep.subr.mxu0 0.0
    %406 = vmatpush1.msra.mxu0 0.0
    %407 = vmatprep.subr.mxu0 0.0
    %408 = vmatpush1.msra.mxu0 0.0
    %409 = vmatprep.subr.mxu0 0.0
    %410 = vmatpush1.msra.mxu0 0.0
    %411 = vmatprep.subr.mxu0 0.0
    %412 = vmatpush1.msra.mxu0 0.0
    %413 = vmatprep.subr.mxu0 0.0
    %414 = vmatpush1.msra.mxu0 0.0
    %415 = vmatprep.subr.mxu0 0.0
    %416 = vmatpush1.msra.mxu0 0.0
    %417 = vmatprep.subr.mxu0 0.0
    %418 = vmatpush1.msra.mxu0 0.0
    %419 = vmatprep.subr.mxu0 0.0
    %420 = vmatpush1.msra.mxu0 0.0
    %421 = vmatprep.subr.mxu0 0.0
    %422 = vmatpush1.msra.mxu0 0.0
    %423 = vmatprep.subr.mxu0 0.0
    %424 = vmatpush1.msra.mxu0 0.0
    %425 = vmatprep.subr.mxu0 0.0
    %426 = vmatpush1.msra.mxu0 %v358
    %427 = vmatprep.subr.mxu0 0.0
    %428 = vmatpush1.msra.mxu0 %v357
    %429 = vmatprep.subr.mxu0 0.0
    %430 = vmatpush1.msra.mxu0 %v356
    %431 = vmatprep.subr.mxu0 0.0
    %432 = vmatpush1.msra.mxu0 %v355
    %433 = vmatprep.subr.mxu0 0.0
    %434 = vmatpush2.msra.mxu0 0.0
    %435 = vmatprep.subr.mxu0 0.0
    %436 = vmatpush2.msra.mxu0 0.0
    %437 = vmatprep.subr.mxu0 0.0
    %438 = vmatpush2.msra.mxu0 0.0
    %439 = vmatprep.subr.mxu0 0.0
    %440 = vmatpush2.msra.mxu0 0.0
    %441 = vmatprep.subr.mxu0 0.0
    %442 = vmatpush2.msra.mxu0 0.0
    %443 = vmatprep.subr.mxu0 0.0
    %444 = vmatpush2.msra.mxu0 0.0
    %445 = vmatprep.subr.mxu0 0.0
    %446 = vmatpush2.msra.mxu0 0.0
    %447 = vmatprep.subr.mxu0 0.0
    %448 = vmatpush2.msra.mxu0 0.0
    %449 = vmatprep.subr.mxu0 0.0
    %450 = vmatpush2.msra.mxu0 0.0
    %451 = vmatprep.subr.mxu0 0.0
    %452 = vmatpush2.msra.mxu0 0.0
    %453 = vmatprep.subr.mxu0 0.0
    %454 = vmatpush2.msra.mxu0 0.0
    %455 = vmatprep.subr.mxu0 0.0
    %456 = vmatpush2.msra.mxu0 0.0
    %457 = vmatprep.subr.mxu0 0.0
    %458 = vmatpush2.msra.mxu0 0.0
    %459 = vmatprep.subr.mxu0 0.0
    %460 = vmatpush2.msra.mxu0 0.0
    %461 = vmatprep.subr.mxu0 0.0
    %462 = vmatpush2.msra.mxu0 0.0
    %463 = vmatprep.subr.mxu0 0.0
    %464 = vmatpush2.msra.mxu0 0.0
    %465 = vmatprep.mubr.f32.mxu0 0.0
    %466 = vmatmul.mubr.f32.gmra.mxu0 %v390
    %v467 = vpop.f32.mrf.mxu0
    %v468 = vadd.f32 %v372, %v467
    %v469 = vpop.f32.mrf.mxu0
    %470 = vmatprep.mubr.f32.mxu0 0.0
    %471 = vmatmul.mubr.f32.gmra.mxu0 %v393
    %v472 = vpop.f32.mrf.mxu0
    %v473 = vadd.f32 %v377, %v472
    %v474 = vpop.f32.mrf.mxu0
    %475 = vmatprep.mubr.f32.mxu0 0.0
    %476 = vmatmul.mubr.f32.gmra.mxu0 %v396
    %v477 = vpop.f32.mrf.mxu0
    %v478 = vadd.f32 %v382, %v477
    %v479 = vpop.f32.mrf.mxu0
    %480 = vmatprep.mubr.f32.mxu0 0.0
    %481 = vmatmul.mubr.f32.gmra.mxu0 %v399
    %v482 = vpop.f32.mrf.mxu0
    %v483 = vadd.f32 %v387, %v482
    %v484 = vpop.f32.mrf.mxu0
    %485 = vdwg.mxu0
    %v486 = vmul.f32 %v468, 0.01
    %v487 = vmul.f32 %v473, 0.01
    %v488 = vmul.f32 %v478, 0.01
    %v489 = vmul.f32 %v483, 0.01
    %v490 = vmax.f32 %v468, %v486
    %v491 = vmax.f32 %v473, %v487
    %v492 = vmax.f32 %v478, %v488
    %v493 = vmax.f32 %v483, %v489
    %s494 = scalar_lea.vmem %s2, 64
    %v495 = vld [vmem:[%s494] sm:$0xff]
    %v496 = vld [vmem:[%s494 + $0x8] sm:$0xff]
    %v497 = vld [vmem:[%s494 + $0x10] sm:$0xff]
    %v498 = vld [vmem:[%s494 + $0x18] sm:$0xff]
    %s499 = scalar_lea.vmem %s3, 96
    %v500 = vld [vmem:[%s499] sm:$0xff]
    %v501 = vld [vmem:[%s499 + $0x8] sm:$0xff]
    %v502 = vld [vmem:[%s499 + $0x10] sm:$0xff]
    %v503 = vld [vmem:[%s499 + $0x18] sm:$0xff]
    %505 = vset.pattern.permute.xlu0 0
    %506 = vperm.xlu0 %505, %v500
    %v507 = vpop.permute.xlu0 %506
    %510 = vset.pattern.permute.xlu0 0
    %511 = vperm.xlu0 %510, %v501
    %v512 = vpop.permute.xlu0 %511
    %515 = vset.pattern.permute.xlu0 0
    %516 = vperm.xlu0 %515, %v502
    %v517 = vpop.permute.xlu0 %516
    %520 = vset.pattern.permute.xlu0 0
    %521 = vperm.xlu0 %520, %v503
    %v522 = vpop.permute.xlu0 %521
    %v525 = vsel %vm253, %v495, 0
    %v528 = vsel %vm253, %v496, 0
    %v531 = vsel %vm253, %v497, 0
    %v534 = vsel %vm253, %v498, 0
    %536 = vmatprep.subr.mxu0 0.0
    %537 = vmatpush1.msra.mxu0 0.0
    %538 = vmatprep.subr.mxu0 0.0
    %539 = vmatpush1.msra.mxu0 0.0
    %540 = vmatprep.subr.mxu0 0.0
    %541 = vmatpush1.msra.mxu0 0.0
    %542 = vmatprep.subr.mxu0 0.0
    %543 = vmatpush1.msra.mxu0 0.0
    %544 = vmatprep.subr.mxu0 0.0
    %545 = vmatpush1.msra.mxu0 0.0
    %546 = vmatprep.subr.mxu0 0.0
    %547 = vmatpush1.msra.mxu0 0.0
    %548 = vmatprep.subr.mxu0 0.0
    %549 = vmatpush1.msra.mxu0 0.0
    %550 = vmatprep.subr.mxu0 0.0
    %551 = vmatpush1.msra.mxu0 0.0
    %552 = vmatprep.subr.mxu0 0.0
    %553 = vmatpush1.msra.mxu0 0.0
    %554 = vmatprep.subr.mxu0 0.0
    %555 = vmatpush1.msra.mxu0 0.0
    %556 = vmatprep.subr.mxu0 0.0
    %557 = vmatpush1.msra.mxu0 0.0
    %558 = vmatprep.subr.mxu0 0.0
    %559 = vmatpush1.msra.mxu0 0.0
    %560 = vmatprep.subr.mxu0 0.0
    %561 = vmatpush1.msra.mxu0 %v493
    %562 = vmatprep.subr.mxu0 0.0
    %563 = vmatpush1.msra.mxu0 %v492
    %564 = vmatprep.subr.mxu0 0.0
    %565 = vmatpush1.msra.mxu0 %v491
    %566 = vmatprep.subr.mxu0 0.0
    %567 = vmatpush1.msra.mxu0 %v490
    %568 = vmatprep.subr.mxu0 0.0
    %569 = vmatpush2.msra.mxu0 0.0
    %570 = vmatprep.subr.mxu0 0.0
    %571 = vmatpush2.msra.mxu0 0.0
    %572 = vmatprep.subr.mxu0 0.0
    %573 = vmatpush2.msra.mxu0 0.0
    %574 = vmatprep.subr.mxu0 0.0
    %575 = vmatpush2.msra.mxu0 0.0
    %576 = vmatprep.subr.mxu0 0.0
    %577 = vmatpush2.msra.mxu0 0.0
    %578 = vmatprep.subr.mxu0 0.0
    %579 = vmatpush2.msra.mxu0 0.0
    %580 = vmatprep.subr.mxu0 0.0
    %581 = vmatpush2.msra.mxu0 0.0
    %582 = vmatprep.subr.mxu0 0.0
    %583 = vmatpush2.msra.mxu0 0.0
    %584 = vmatprep.subr.mxu0 0.0
    %585 = vmatpush2.msra.mxu0 0.0
    %586 = vmatprep.subr.mxu0 0.0
    %587 = vmatpush2.msra.mxu0 0.0
    %588 = vmatprep.subr.mxu0 0.0
    %589 = vmatpush2.msra.mxu0 0.0
    %590 = vmatprep.subr.mxu0 0.0
    %591 = vmatpush2.msra.mxu0 0.0
    %592 = vmatprep.subr.mxu0 0.0
    %593 = vmatpush2.msra.mxu0 0.0
    %594 = vmatprep.subr.mxu0 0.0
    %595 = vmatpush2.msra.mxu0 0.0
    %596 = vmatprep.subr.mxu0 0.0
    %597 = vmatpush2.msra.mxu0 0.0
    %598 = vmatprep.subr.mxu0 0.0
    %599 = vmatpush2.msra.mxu0 0.0
    %600 = vmatprep.mubr.f32.mxu0 0.0
    %601 = vmatmul.mubr.f32.gmra.mxu0 %v525
    %v602 = vpop.f32.mrf.mxu0
    %v603 = vadd.f32 %v507, %v602
    %v604 = vpop.f32.mrf.mxu0
    %605 = vmatprep.mubr.f32.mxu0 0.0
    %606 = vmatmul.mubr.f32.gmra.mxu0 %v528
    %v607 = vpop.f32.mrf.mxu0
    %v608 = vadd.f32 %v512, %v607
    %v609 = vpop.f32.mrf.mxu0
    %610 = vmatprep.mubr.f32.mxu0 0.0
    %611 = vmatmul.mubr.f32.gmra.mxu0 %v531
    %v612 = vpop.f32.mrf.mxu0
    %v613 = vadd.f32 %v517, %v612
    %v614 = vpop.f32.mrf.mxu0
    %615 = vmatprep.mubr.f32.mxu0 0.0
    %616 = vmatmul.mubr.f32.gmra.mxu0 %v534
    %v617 = vpop.f32.mrf.mxu0
    %v618 = vadd.f32 %v522, %v617
    %v619 = vpop.f32.mrf.mxu0
    %620 = vdwg.mxu0
    %v621 = vmul.f32 %v603, 0.01
    %v622 = vmul.f32 %v608, 0.01
    %v623 = vmul.f32 %v613, 0.01
    %v624 = vmul.f32 %v618, 0.01
    %v625 = vmax.f32 %v603, %v621
    %v626 = vmax.f32 %v608, %v622
    %v627 = vmax.f32 %v613, %v623
    %v628 = vmax.f32 %v618, %v624
    %s629 = scalar_lea.vmem %s2, 96
    %v630 = vld [vmem:[%s629] sm:$0xff]
    %v631 = vld [vmem:[%s629 + $0x8] sm:$0xff]
    %v632 = vld [vmem:[%s629 + $0x10] sm:$0xff]
    %v633 = vld [vmem:[%s629 + $0x18] sm:$0xff]
    %s634 = scalar_lea.vmem %s3, 128
    %v635 = vld [vmem:[%s634] sm:$0xff]
    %v636 = vld [vmem:[%s634 + $0x8] sm:$0xff]
    %v637 = vld [vmem:[%s634 + $0x10] sm:$0xff]
    %v638 = vld [vmem:[%s634 + $0x18] sm:$0xff]
    %640 = vset.pattern.permute.xlu0 0
    %641 = vperm.xlu0 %640, %v635
    %v642 = vpop.permute.xlu0 %641
    %645 = vset.pattern.permute.xlu0 0
    %646 = vperm.xlu0 %645, %v636
    %v647 = vpop.permute.xlu0 %646
    %650 = vset.pattern.permute.xlu0 0
    %651 = vperm.xlu0 %650, %v637
    %v652 = vpop.permute.xlu0 %651
    %655 = vset.pattern.permute.xlu0 0
    %656 = vperm.xlu0 %655, %v638
    %v657 = vpop.permute.xlu0 %656
    %v660 = vsel %vm253, %v630, 0
    %v663 = vsel %vm253, %v631, 0
    %v666 = vsel %vm253, %v632, 0
    %v669 = vsel %vm253, %v633, 0
    %671 = vmatprep.subr.mxu0 0.0
    %672 = vmatpush1.msra.mxu0 0.0
    %673 = vmatprep.subr.mxu0 0.0
    %674 = vmatpush1.msra.mxu0 0.0
    %675 = vmatprep.subr.mxu0 0.0
    %676 = vmatpush1.msra.mxu0 0.0
    %677 = vmatprep.subr.mxu0 0.0
    %678 = vmatpush1.msra.mxu0 0.0
    %679 = vmatprep.subr.mxu0 0.0
    %680 = vmatpush1.msra.mxu0 0.0
    %681 = vmatprep.subr.mxu0 0.0
    %682 = vmatpush1.msra.mxu0 0.0
    %683 = vmatprep.subr.mxu0 0.0
    %684 = vmatpush1.msra.mxu0 0.0
    %685 = vmatprep.subr.mxu0 0.0
    %686 = vmatpush1.msra.mxu0 0.0
    %687 = vmatprep.subr.mxu0 0.0
    %688 = vmatpush1.msra.mxu0 0.0
    %689 = vmatprep.subr.mxu0 0.0
    %690 = vmatpush1.msra.mxu0 0.0
    %691 = vmatprep.subr.mxu0 0.0
    %692 = vmatpush1.msra.mxu0 0.0
    %693 = vmatprep.subr.mxu0 0.0
    %694 = vmatpush1.msra.mxu0 0.0
    %695 = vmatprep.subr.mxu0 0.0
    %696 = vmatpush1.msra.mxu0 %v628
    %697 = vmatprep.subr.mxu0 0.0
    %698 = vmatpush1.msra.mxu0 %v627
    %699 = vmatprep.subr.mxu0 0.0
    %700 = vmatpush1.msra.mxu0 %v626
    %701 = vmatprep.subr.mxu0 0.0
    %702 = vmatpush1.msra.mxu0 %v625
    %703 = vmatprep.subr.mxu0 0.0
    %704 = vmatpush2.msra.mxu0 0.0
    %705 = vmatprep.subr.mxu0 0.0
    %706 = vmatpush2.msra.mxu0 0.0
    %707 = vmatprep.subr.mxu0 0.0
    %708 = vmatpush2.msra.mxu0 0.0
    %709 = vmatprep.subr.mxu0 0.0
    %710 = vmatpush2.msra.mxu0 0.0
    %711 = vmatprep.subr.mxu0 0.0
    %712 = vmatpush2.msra.mxu0 0.0
    %713 = vmatprep.subr.mxu0 0.0
    %714 = vmatpush2.msra.mxu0 0.0
    %715 = vmatprep.subr.mxu0 0.0
    %716 = vmatpush2.msra.mxu0 0.0
    %717 = vmatprep.subr.mxu0 0.0
    %718 = vmatpush2.msra.mxu0 0.0
    %719 = vmatprep.subr.mxu0 0.0
    %720 = vmatpush2.msra.mxu0 0.0
    %721 = vmatprep.subr.mxu0 0.0
    %722 = vmatpush2.msra.mxu0 0.0
    %723 = vmatprep.subr.mxu0 0.0
    %724 = vmatpush2.msra.mxu0 0.0
    %725 = vmatprep.subr.mxu0 0.0
    %726 = vmatpush2.msra.mxu0 0.0
    %727 = vmatprep.subr.mxu0 0.0
    %728 = vmatpush2.msra.mxu0 0.0
    %729 = vmatprep.subr.mxu0 0.0
    %730 = vmatpush2.msra.mxu0 0.0
    %731 = vmatprep.subr.mxu0 0.0
    %732 = vmatpush2.msra.mxu0 0.0
    %733 = vmatprep.subr.mxu0 0.0
    %734 = vmatpush2.msra.mxu0 0.0
    %735 = vmatprep.mubr.f32.mxu0 0.0
    %736 = vmatmul.mubr.f32.gmra.mxu0 %v660
    %v737 = vpop.f32.mrf.mxu0
    %v738 = vadd.f32 %v642, %v737
    %v739 = vpop.f32.mrf.mxu0
    %740 = vmatprep.mubr.f32.mxu0 0.0
    %741 = vmatmul.mubr.f32.gmra.mxu0 %v663
    %v742 = vpop.f32.mrf.mxu0
    %v743 = vadd.f32 %v647, %v742
    %v744 = vpop.f32.mrf.mxu0
    %745 = vmatprep.mubr.f32.mxu0 0.0
    %746 = vmatmul.mubr.f32.gmra.mxu0 %v666
    %v747 = vpop.f32.mrf.mxu0
    %v748 = vadd.f32 %v652, %v747
    %v749 = vpop.f32.mrf.mxu0
    %750 = vmatprep.mubr.f32.mxu0 0.0
    %751 = vmatmul.mubr.f32.gmra.mxu0 %v669
    %v752 = vpop.f32.mrf.mxu0
    %v753 = vadd.f32 %v657, %v752
    %v754 = vpop.f32.mrf.mxu0
    %755 = vdwg.mxu0
    %v756 = vmul.f32 %v738, 0.01
    %v757 = vmul.f32 %v743, 0.01
    %v758 = vmul.f32 %v748, 0.01
    %v759 = vmul.f32 %v753, 0.01
    %v760 = vmax.f32 %v738, %v756
    %v761 = vmax.f32 %v743, %v757
    %v762 = vmax.f32 %v748, %v758
    %v763 = vmax.f32 %v753, %v759
    %v764 = vld [vmem:[%s4] sm:$0x1]
    %v765 = vld [vmem:[#allocation2] sm:$0x1]
    %767 = vset.pattern.permute.xlu0 0
    %768 = vperm.xlu0 %767, %v765
    %v769 = vpop.permute.xlu0 %768
    %v771 = vlaneseq
    %v772 = vshrl.u32 %v771, 7
    %v773 = vsub.s32 0, %v772
    %v774 = vrot.slane %v769, %v773
    %v776 = vsel %vm253, %v764, 0
    %778 = vmatprep.subr.mxu0 0.0
    %779 = vmatpush1.msra.mxu0 0.0
    %780 = vmatprep.subr.mxu0 0.0
    %781 = vmatpush1.msra.mxu0 0.0
    %782 = vmatprep.subr.mxu0 0.0
    %783 = vmatpush1.msra.mxu0 0.0
    %784 = vmatprep.subr.mxu0 0.0
    %785 = vmatpush1.msra.mxu0 0.0
    %786 = vmatprep.subr.mxu0 0.0
    %787 = vmatpush1.msra.mxu0 0.0
    %788 = vmatprep.subr.mxu0 0.0
    %789 = vmatpush1.msra.mxu0 0.0
    %790 = vmatprep.subr.mxu0 0.0
    %791 = vmatpush1.msra.mxu0 0.0
    %792 = vmatprep.subr.mxu0 0.0
    %793 = vmatpush1.msra.mxu0 0.0
    %794 = vmatprep.subr.mxu0 0.0
    %795 = vmatpush1.msra.mxu0 0.0
    %796 = vmatprep.subr.mxu0 0.0
    %797 = vmatpush1.msra.mxu0 0.0
    %798 = vmatprep.subr.mxu0 0.0
    %799 = vmatpush1.msra.mxu0 0.0
    %800 = vmatprep.subr.mxu0 0.0
    %801 = vmatpush1.msra.mxu0 0.0
    %802 = vmatprep.subr.mxu0 0.0
    %803 = vmatpush1.msra.mxu0 %v763
    %804 = vmatprep.subr.mxu0 0.0
    %805 = vmatpush1.msra.mxu0 %v762
    %806 = vmatprep.subr.mxu0 0.0
    %807 = vmatpush1.msra.mxu0 %v761
    %808 = vmatprep.subr.mxu0 0.0
    %809 = vmatpush1.msra.mxu0 %v760
    %810 = vmatprep.subr.mxu0 0.0
    %811 = vmatpush2.msra.mxu0 0.0
    %812 = vmatprep.subr.mxu0 0.0
    %813 = vmatpush2.msra.mxu0 0.0
    %814 = vmatprep.subr.mxu0 0.0
    %815 = vmatpush2.msra.mxu0 0.0
    %816 = vmatprep.subr.mxu0 0.0
    %817 = vmatpush2.msra.mxu0 0.0
    %818 = vmatprep.subr.mxu0 0.0
    %819 = vmatpush2.msra.mxu0 0.0
    %820 = vmatprep.subr.mxu0 0.0
    %821 = vmatpush2.msra.mxu0 0.0
    %822 = vmatprep.subr.mxu0 0.0
    %823 = vmatpush2.msra.mxu0 0.0
    %824 = vmatprep.subr.mxu0 0.0
    %825 = vmatpush2.msra.mxu0 0.0
    %826 = vmatprep.subr.mxu0 0.0
    %827 = vmatpush2.msra.mxu0 0.0
    %828 = vmatprep.subr.mxu0 0.0
    %829 = vmatpush2.msra.mxu0 0.0
    %830 = vmatprep.subr.mxu0 0.0
    %831 = vmatpush2.msra.mxu0 0.0
    %832 = vmatprep.subr.mxu0 0.0
    %833 = vmatpush2.msra.mxu0 0.0
    %834 = vmatprep.subr.mxu0 0.0
    %835 = vmatpush2.msra.mxu0 0.0
    %836 = vmatprep.subr.mxu0 0.0
    %837 = vmatpush2.msra.mxu0 0.0
    %838 = vmatprep.subr.mxu0 0.0
    %839 = vmatpush2.msra.mxu0 0.0
    %840 = vmatprep.subr.mxu0 0.0
    %841 = vmatpush2.msra.mxu0 0.0
    %842 = vmatprep.mubr.f32.mxu0 0.0
    %843 = vmatmul.mubr.f32.gmra.mxu0 %v776
    %v844 = vpop.f32.mrf.mxu0
    %v845 = vadd.f32 %v774, %v844
    %v846 = vpop.f32.mrf.mxu0
    %847 = vdwg.mxu0
    %848 = vst [vmem:[#allocation3] sm:$0x1] %v845
    // Predicated region
    $region26: #{tpu_custom_call.1} parent=1 // pred_check
      _
    $region27: #{tpu_custom_call.1} parent=1 // pred_check_branch
      %850 = sbr.rel (0) target = $region29
    $region28: #{tpu_custom_call.1} parent=1 // pred_region
      %s852 = ssub.s32 16, 16
      %853 = vsyncadd [#allocation4], %s852
      %s855 = sshll.u32 [#allocation3], 4
      %s856 = int_to_ptr.vmem [resolvable:$true] %s855
      %858 = dma.vmem_to_hbm [thread:$0]  %s856, 16, %s6, [#allocation4]
    $region29: #{tpu_custom_call.1} parent=1 // pred_fallthru
      _
    // Predicated region
    $region30: #{tpu_custom_call.1} parent=1 // pred_check
      _
    $region31: #{tpu_custom_call.1} parent=1 // pred_check_branch
      %860 = sbr.rel (0) target = $region33
    $region32: #{tpu_custom_call.1} parent=1 // pred_region
      %861 = dma.done [#allocation4], 16
    $region33: #{tpu_custom_call.1} parent=1 // pred_fallthru
      _
    %862 = vsyncpa [#allocation4], 1

</llo_original>
